<compile_context>
chip_gen: v7x
topology: tpu7x:2x2x1
jax: 0.10.0
libtpu: 0.0.40
codegen_flags: <defaults>
</compile_context>

<pallas_src>
import functools

import jax
import jax.numpy as jnp
from jax.experimental import pallas as pl
from jax.experimental.pallas import tpu as pltpu

EPS = 1e-5


def residual_block_kernel(x_ref, w1_ref, w2_ref, wd_ref, bn_ref, mask_ref,
                          o_ref, *, H, W, cdtype, use_downsample):
    x = x_ref[...]                        # [C1, M]   compute dtype
    M = x.shape[1]
    Cout = o_ref.shape[0]

    bn = bn_ref[...]                      # [Cout, 8] f32: g1,b1,g2,b2,gd,bd,0,0
    masks = mask_ref[...]                 # [8, M]    compute dtype, 0/1
    # Hoist the 8 border-mask rows once; reused by BOTH 3x3 convs
    # (JAX does not CSE broadcasts, so don't rebuild them per conv).
    mask_rows = [masks[r:r + 1, :] for r in range(8)]

    TAPS = ((-1, -1), (-1, 0), (-1, 1),
            (0, -1),  (0, 0),  (0, 1),
            (1, -1),  (1, 0),  (1, 1))

    def conv3x3(act, wmat):
        # Single im2col matmul per conv: wmat[Cout, 9*C] @ patches[9*C, M].
        # Taps are XLU lane rolls + precomputed border masks (VPU multiply);
        # channel blocks are 8-row aligned so the concat is plain stacking.
        blocks = []
        for t, (dh, dw) in enumerate(TAPS):
            s = dh * W + dw
            v = act if s == 0 else pltpu.roll(act, shift=(-s) % M, axis=1)
            if (dh, dw) != (0, 0):
                v = v * mask_rows[t if t < 4 else t - 1]
            blocks.append(v)
        patches = jnp.concatenate(blocks, axis=0)
        return jnp.dot(wmat, patches, preferred_element_type=jnp.float32)

    def bn_fold(y, gamma, beta):
        # Training-mode BatchNorm folded into per-channel scale/shift.
        # Two-pass (centred) variance for numerical robustness; rsqrt -> EUP.
        inv_m = 1.0 / y.shape[1]
        mean = jnp.sum(y, axis=1, keepdims=True) * inv_m
        d = y - mean
        var = jnp.sum(d * d, axis=1, keepdims=True) * inv_m
        scale = jax.lax.rsqrt(var + EPS) * gamma
        shift = beta - mean * scale
        return scale, shift

    # ---- layer1: conv3x3(pad=1) -> BN -> ReLU ------------------------------
    y1 = conv3x3(x, w1_ref[...])                       # [Cout, M] f32
    s1, t1 = bn_fold(y1, bn[:, 0:1], bn[:, 1:2])
    a1 = jnp.maximum(y1 * s1 + t1, 0.0).astype(cdtype)  # stays VMEM-resident

    # ---- layer2: conv3x3(pad=1) -> BN (fused into epilogue) ----------------
    y2 = conv3x3(a1, w2_ref[...])
    s2, t2 = bn_fold(y2, bn[:, 2:3], bn[:, 3:4])
    out = y2 * s2 + t2

    # ---- skip branch -------------------------------------------------------
    if use_downsample:                    # 1x1 conv -> BN
        yd = jnp.dot(wd_ref[...], x, preferred_element_type=jnp.float32)
        sd, td = bn_fold(yd, bn[:, 4:5], bn[:, 5:6])
        identity = yd * sd + td
    else:                                 # identity skip (stride=1, Cin==Cout)
        identity = x[:Cout, :].astype(jnp.float32)

    # ---- fused epilogue: residual add + ReLU, lane-dense [Cout, M] store ---
    o_ref[...] = jnp.maximum(out + identity, 0.0)


def residual_block(x_nchw, params, *, stride=1, matmul_dtype=jnp.bfloat16):
    """Pallas implementation of ResidualBlock.forward (stride=1)."""
    if stride != 1:
        # TODO(synk): stride != 1 not implemented.
        raise NotImplementedError("stride != 1 not supported")

    N, Cin, H, W = x_nchw.shape
    Cout = params["w1"].shape[0]
    M = N * H * W
    C1 = ((Cin + 7) // 8) * 8             # sublane-aligned input channel count
    use_downsample = (stride != 1) or (Cin != Cout)
    cdtype = matmul_dtype

    # Channels-on-sublanes / pixels-on-lanes slab, zero-padded to C1 rows.
    x_cm = jnp.transpose(x_nchw, (1, 0, 2, 3)).reshape(Cin, M)
    x_cm = jnp.pad(x_cm.astype(jnp.float32), ((0, C1 - Cin), (0, 0))).astype(cdtype)

    # PyTorch OIHW -> im2col matrices matching the kernel tap order
    # (kh-major, then kw, then input channel), input channels zero-padded.
    def im2col_3x3(w_oihw, c_pad):
        O, I, KH, KW = w_oihw.shape
        wp = jnp.pad(w_oihw.astype(jnp.float32),
                     ((0, 0), (0, c_pad - I), (0, 0), (0, 0)))
        return jnp.transpose(wp, (0, 2, 3, 1)).reshape(O, KH * KW * c_pad)

    w1 = im2col_3x3(params["w1"], C1).astype(cdtype)        # [Cout, 9*C1]
    w2 = im2col_3x3(params["w2"], Cout).astype(cdtype)      # [Cout, 9*Cout]
    wd_raw = (params["wd"][:, :, 0, 0] if use_downsample
              else jnp.zeros((Cout, Cin), jnp.float32))
    wd = jnp.pad(wd_raw.astype(jnp.float32),
                 ((0, 0), (0, C1 - Cin))).astype(cdtype)     # [Cout, C1]

    # Six BN vectors packed into one [Cout, 8] slab: g1,b1,g2,b2,gd,bd,0,0.
    def vec(name):
        return params.get(name, jnp.zeros((Cout,))).astype(jnp.float32)
    zero = jnp.zeros((Cout,), jnp.float32)
    bn_pack = jnp.stack([vec("g1"), vec("b1"), vec("g2"), vec("b2"),
                         vec("gd"), vec("bd"), zero, zero], axis=1)

    # Precomputed (h, w) border masks -> one [8, M] slab in kernel tap order
    # (centre tap excluded).  Built host/XLA-side: no in-kernel div/mod.
    idx = jnp.arange(M, dtype=jnp.int32)
    w_pos = idx % W
    h_pos = (idx // W) % H
    ones = jnp.ones((M,), dtype=bool)
    hm = {-1: h_pos >= 1, 0: ones, 1: h_pos <= H - 2}
    wm = {-1: w_pos >= 1, 0: ones, 1: w_pos <= W - 2}
    rows = [hm[dh] & wm[dw]
            for dh in (-1, 0, 1) for dw in (-1, 0, 1) if (dh, dw) != (0, 0)]
    masks = jnp.stack(rows, axis=0).astype(cdtype)           # [8, M]

    kernel = functools.partial(residual_block_kernel, H=H, W=W,
                               cdtype=cdtype, use_downsample=use_downsample)

    esize = jnp.dtype(cdtype).itemsize
    flops = (2 * M * Cout * (9 * C1 + 9 * Cout
                             + (C1 if use_downsample else 0))
             + 12 * M * Cout)                                 # BN/ReLU epilogue
    bytes_accessed = ((x_cm.size + masks.size + w1.size + w2.size + wd.size)
                      * esize + bn_pack.size * 4 + Cout * M * 4)
    cost = pl.CostEstimate(flops=flops,
                           transcendentals=(3 if use_downsample else 2) * Cout,
                           bytes_accessed=bytes_accessed)

    vmem = pl.BlockSpec(memory_space=pltpu.MemorySpace.VMEM)
    out_cm = pl.pallas_call(
        kernel,
        out_shape=jax.ShapeDtypeStruct((Cout, M), jnp.float32),
        in_specs=[vmem] * 6,
        out_specs=vmem,
        cost_estimate=cost,
    )(x_cm, w1, w2, wd, bn_pack, masks)

    # Lane-dense [Cout, M] slab -> NCHW.
    return jnp.transpose(out_cm.reshape(Cout, N, H, W), (1, 0, 2, 3))


# ---------------------------- pure-JAX reference -----------------------------
def residual_block_ref(x, params):
    def conv(x, w, pad):
        return jax.lax.conv_general_dilated(
            x, w, window_strides=(1, 1), padding=((pad, pad), (pad, pad)),
            dimension_numbers=("NCHW", "OIHW", "NCHW"))

    def bn(y, g, b):
        mean = jnp.mean(y, axis=(0, 2, 3), keepdims=True)
        var = jnp.mean((y - mean) ** 2, axis=(0, 2, 3), keepdims=True)
        return ((y - mean) / jnp.sqrt(var + EPS)
                * g[None, :, None, None] + b[None, :, None, None])

    out = jax.nn.relu(bn(conv(x, params["w1"], 1), params["g1"], params["b1"]))
    out = bn(conv(out, params["w2"], 1), params["g2"], params["b2"])
    identity = bn(conv(x, params["wd"], 0), params["gd"], params["bd"])
    return jax.nn.relu(out + identity)


if __name__ == "__main__":
    N, Cin, Cout, H, W = 2, 4, 8, 16, 16

    key = jax.random.PRNGKey(0)
    ks = jax.random.split(key, 10)
    params = {
        "w1": 0.1 * jax.random.normal(ks[0], (Cout, Cin, 3, 3), jnp.float32),
        "g1": 0.5 + jax.random.uniform(ks[1], (Cout,), jnp.float32),
        "b1": 0.1 * jax.random.normal(ks[2], (Cout,), jnp.float32),
        "w2": 0.1 * jax.random.normal(ks[3], (Cout, Cout, 3, 3), jnp.float32),
        "g2": 0.5 + jax.random.uniform(ks[4], (Cout,), jnp.float32),
        "b2": 0.1 * jax.random.normal(ks[5], (Cout,), jnp.float32),
        "wd": 0.1 * jax.random.normal(ks[6], (Cout, Cin, 1, 1), jnp.float32),
        "gd": 0.5 + jax.random.uniform(ks[7], (Cout,), jnp.float32),
        "bd": 0.1 * jax.random.normal(ks[8], (Cout,), jnp.float32),
    }
    x = jax.random.normal(ks[9], (N, Cin, H, W), jnp.float32)

    ref = jax.block_until_ready(residual_block_ref(x, params))

    # f32 MXU operands: bit-tight check against the f32 reference.
    out_f32 = jax.block_until_ready(
        residual_block(x, params, matmul_dtype=jnp.float32))
    assert out_f32.shape == (N, Cout, H, W), out_f32.shape
    assert jnp.allclose(out_f32, ref, atol=1e-4, rtol=1e-4), \
        float(jnp.max(jnp.abs(out_f32 - ref)))

    # bf16 MXU operands (default fast path on v6e/v7x): looser tolerance,
    # since the f32 reference never sees bf16 rounding.
    out_bf16 = jax.block_until_ready(residual_block(x, params))
    assert out_bf16.shape == (N, Cout, H, W), out_bf16.shape
    assert jnp.allclose(out_bf16, ref, atol=1e-1, rtol=1e-1), \
        float(jnp.max(jnp.abs(out_bf16 - ref)))

    print("KERNEL_OK")
</pallas_src>

<mosaic_0001>
module attributes {stable_mosaic.version = 11 : i64} {
  func.func @residual_block_kernel(%arg0: memref<8x512xf32, #tpu.memory_space<vmem>>, %arg1: memref<8x72xf32, #tpu.memory_space<vmem>>, %arg2: memref<8x72xf32, #tpu.memory_space<vmem>>, %arg3: memref<8x8xf32, #tpu.memory_space<vmem>>, %arg4: memref<8x8xf32, #tpu.memory_space<vmem>>, %arg5: memref<8x512xf32, #tpu.memory_space<vmem>>, %arg6: memref<8x512xf32, #tpu.memory_space<vmem>>) attributes {dimension_semantics = [], scalar_prefetch = 0 : i64, scratch_operands = 0 : i64, tpu.core_type = #tpu.core_type<tc>} {
    %c0 = arith.constant 0 : index
    %c0_0 = arith.constant 0 : index
    %0 = vector.load %arg0[%c0, %c0_0] : memref<8x512xf32, #tpu.memory_space<vmem>>, vector<8x512xf32>
    %c0_1 = arith.constant 0 : index
    %c0_2 = arith.constant 0 : index
    %1 = vector.load %arg4[%c0_1, %c0_2] : memref<8x8xf32, #tpu.memory_space<vmem>>, vector<8x8xf32>
    %c0_3 = arith.constant 0 : index
    %c0_4 = arith.constant 0 : index
    %2 = vector.load %arg5[%c0_3, %c0_4] : memref<8x512xf32, #tpu.memory_space<vmem>>, vector<8x512xf32>
    %3 = vector.extract_strided_slice %2 {offsets = [0, 0], sizes = [1, 512], strides = [1, 1]} : vector<8x512xf32> to vector<1x512xf32>
    %4 = vector.extract_strided_slice %2 {offsets = [1, 0], sizes = [1, 512], strides = [1, 1]} : vector<8x512xf32> to vector<1x512xf32>
    %5 = vector.extract_strided_slice %2 {offsets = [2, 0], sizes = [1, 512], strides = [1, 1]} : vector<8x512xf32> to vector<1x512xf32>
    %6 = vector.extract_strided_slice %2 {offsets = [3, 0], sizes = [1, 512], strides = [1, 1]} : vector<8x512xf32> to vector<1x512xf32>
    %7 = vector.extract_strided_slice %2 {offsets = [4, 0], sizes = [1, 512], strides = [1, 1]} : vector<8x512xf32> to vector<1x512xf32>
    %8 = vector.extract_strided_slice %2 {offsets = [5, 0], sizes = [1, 512], strides = [1, 1]} : vector<8x512xf32> to vector<1x512xf32>
    %9 = vector.extract_strided_slice %2 {offsets = [6, 0], sizes = [1, 512], strides = [1, 1]} : vector<8x512xf32> to vector<1x512xf32>
    %10 = vector.extract_strided_slice %2 {offsets = [7, 0], sizes = [1, 512], strides = [1, 1]} : vector<8x512xf32> to vector<1x512xf32>
    %c0_5 = arith.constant 0 : index
    %c0_6 = arith.constant 0 : index
    %11 = vector.load %arg1[%c0_5, %c0_6] : memref<8x72xf32, #tpu.memory_space<vmem>>, vector<8x72xf32>
    %c17_i32 = arith.constant 17 : i32
    %12 = tpu.dynamic_rotate %0 by %c17_i32 dim 1 : vector<8x512xf32>, i32 -> vector<8x512xf32>
    %13 = vector.broadcast %3 : vector<1x512xf32> to vector<8x512xf32>
    %14 = arith.mulf %12, %13 : vector<8x512xf32>
    %c16_i32 = arith.constant 16 : i32
    %15 = tpu.dynamic_rotate %0 by %c16_i32 dim 1 : vector<8x512xf32>, i32 -> vector<8x512xf32>
    %16 = vector.broadcast %4 : vector<1x512xf32> to vector<8x512xf32>
    %17 = arith.mulf %15, %16 : vector<8x512xf32>
    %c15_i32 = arith.constant 15 : i32
    %18 = tpu.dynamic_rotate %0 by %c15_i32 dim 1 : vector<8x512xf32>, i32 -> vector<8x512xf32>
    %19 = vector.broadcast %5 : vector<1x512xf32> to vector<8x512xf32>
    %20 = arith.mulf %18, %19 : vector<8x512xf32>
    %c1_i32 = arith.constant 1 : i32
    %21 = tpu.dynamic_rotate %0 by %c1_i32 dim 1 : vector<8x512xf32>, i32 -> vector<8x512xf32>
    %22 = vector.broadcast %6 : vector<1x512xf32> to vector<8x512xf32>
    %23 = arith.mulf %21, %22 : vector<8x512xf32>
    %c511_i32 = arith.constant 511 : i32
    %24 = tpu.dynamic_rotate %0 by %c511_i32 dim 1 : vector<8x512xf32>, i32 -> vector<8x512xf32>
    %25 = vector.broadcast %7 : vector<1x512xf32> to vector<8x512xf32>
    %26 = arith.mulf %24, %25 : vector<8x512xf32>
    %c497_i32 = arith.constant 497 : i32
    %27 = tpu.dynamic_rotate %0 by %c497_i32 dim 1 : vector<8x512xf32>, i32 -> vector<8x512xf32>
    %28 = vector.broadcast %8 : vector<1x512xf32> to vector<8x512xf32>
    %29 = arith.mulf %27, %28 : vector<8x512xf32>
    %c496_i32 = arith.constant 496 : i32
    %30 = tpu.dynamic_rotate %0 by %c496_i32 dim 1 : vector<8x512xf32>, i32 -> vector<8x512xf32>
    %31 = vector.broadcast %9 : vector<1x512xf32> to vector<8x512xf32>
    %32 = arith.mulf %30, %31 : vector<8x512xf32>
    %c495_i32 = arith.constant 495 : i32
    %33 = tpu.dynamic_rotate %0 by %c495_i32 dim 1 : vector<8x512xf32>, i32 -> vector<8x512xf32>
    %34 = vector.broadcast %10 : vector<1x512xf32> to vector<8x512xf32>
    %35 = arith.mulf %33, %34 : vector<8x512xf32>
    %36 = tpu.concatenate %14, %17, %20, %23, %0, %26, %29, %32, %35 in 0 : vector<8x512xf32>, vector<8x512xf32>, vector<8x512xf32>, vector<8x512xf32>, vector<8x512xf32>, vector<8x512xf32>, vector<8x512xf32>, vector<8x512xf32>, vector<8x512xf32> -> vector<72x512xf32>
    %cst = arith.constant dense<0.000000e+00> : vector<8x512xf32>
    %37 = tpu.matmul %11, %36, %cst {dimension_numbers = #tpu.dot_dimension_numbers<[1], [0], [0], [1], [0, 0, 1, 1], [], []>} : vector<8x72xf32>, vector<72x512xf32>, vector<8x512xf32> -> vector<8x512xf32>
    %38 = vector.extract_strided_slice %1 {offsets = [0, 0], sizes = [8, 1], strides = [1, 1]} : vector<8x8xf32> to vector<8x1xf32>
    %39 = vector.extract_strided_slice %1 {offsets = [0, 1], sizes = [8, 1], strides = [1, 1]} : vector<8x8xf32> to vector<8x1xf32>
    %cst_7 = arith.constant dense<0.000000e+00> : vector<8xf32>
    %40 = vector.multi_reduction <add>, %37, %cst_7 [1] : vector<8x512xf32> to vector<8xf32>
    %41 = vector.shape_cast %40 : vector<8xf32> to vector<8x1xf32>
    %cst_8 = arith.constant 0.001953125 : f32
    %42 = vector.broadcast %cst_8 : f32 to vector<8x1xf32>
    %43 = arith.mulf %41, %42 : vector<8x1xf32>
    %44 = vector.broadcast %43 : vector<8x1xf32> to vector<8x512xf32>
    %45 = arith.subf %37, %44 : vector<8x512xf32>
    %46 = arith.mulf %45, %45 : vector<8x512xf32>
    %cst_9 = arith.constant dense<0.000000e+00> : vector<8xf32>
    %47 = vector.multi_reduction <add>, %46, %cst_9 [1] : vector<8x512xf32> to vector<8xf32>
    %48 = vector.shape_cast %47 : vector<8xf32> to vector<8x1xf32>
    %cst_10 = arith.constant 0.001953125 : f32
    %49 = vector.broadcast %cst_10 : f32 to vector<8x1xf32>
    %50 = arith.mulf %48, %49 : vector<8x1xf32>
    %cst_11 = arith.constant 9.99999974E-6 : f32
    %51 = vector.broadcast %cst_11 : f32 to vector<8x1xf32>
    %52 = arith.addf %50, %51 : vector<8x1xf32>
    %53 = math.rsqrt %52 : vector<8x1xf32>
    %54 = arith.mulf %53, %38 : vector<8x1xf32>
    %55 = arith.mulf %43, %54 : vector<8x1xf32>
    %56 = arith.subf %39, %55 : vector<8x1xf32>
    %57 = vector.broadcast %54 : vector<8x1xf32> to vector<8x512xf32>
    %58 = arith.mulf %37, %57 : vector<8x512xf32>
    %59 = vector.broadcast %56 : vector<8x1xf32> to vector<8x512xf32>
    %60 = arith.addf %58, %59 : vector<8x512xf32>
    %cst_12 = arith.constant 0.000000e+00 : f32
    %61 = vector.broadcast %cst_12 : f32 to vector<8x512xf32>
    %62 = arith.maximumf %60, %61 : vector<8x512xf32>
    %c0_13 = arith.constant 0 : index
    %c0_14 = arith.constant 0 : index
    %63 = vector.load %arg2[%c0_13, %c0_14] : memref<8x72xf32, #tpu.memory_space<vmem>>, vector<8x72xf32>
    %c17_i32_15 = arith.constant 17 : i32
    %64 = tpu.dynamic_rotate %62 by %c17_i32_15 dim 1 : vector<8x512xf32>, i32 -> vector<8x512xf32>
    %65 = vector.broadcast %3 : vector<1x512xf32> to vector<8x512xf32>
    %66 = arith.mulf %64, %65 : vector<8x512xf32>
    %c16_i32_16 = arith.constant 16 : i32
    %67 = tpu.dynamic_rotate %62 by %c16_i32_16 dim 1 : vector<8x512xf32>, i32 -> vector<8x512xf32>
    %68 = vector.broadcast %4 : vector<1x512xf32> to vector<8x512xf32>
    %69 = arith.mulf %67, %68 : vector<8x512xf32>
    %c15_i32_17 = arith.constant 15 : i32
    %70 = tpu.dynamic_rotate %62 by %c15_i32_17 dim 1 : vector<8x512xf32>, i32 -> vector<8x512xf32>
    %71 = vector.broadcast %5 : vector<1x512xf32> to vector<8x512xf32>
    %72 = arith.mulf %70, %71 : vector<8x512xf32>
    %c1_i32_18 = arith.constant 1 : i32
    %73 = tpu.dynamic_rotate %62 by %c1_i32_18 dim 1 : vector<8x512xf32>, i32 -> vector<8x512xf32>
    %74 = vector.broadcast %6 : vector<1x512xf32> to vector<8x512xf32>
    %75 = arith.mulf %73, %74 : vector<8x512xf32>
    %c511_i32_19 = arith.constant 511 : i32
    %76 = tpu.dynamic_rotate %62 by %c511_i32_19 dim 1 : vector<8x512xf32>, i32 -> vector<8x512xf32>
    %77 = vector.broadcast %7 : vector<1x512xf32> to vector<8x512xf32>
    %78 = arith.mulf %76, %77 : vector<8x512xf32>
    %c497_i32_20 = arith.constant 497 : i32
    %79 = tpu.dynamic_rotate %62 by %c497_i32_20 dim 1 : vector<8x512xf32>, i32 -> vector<8x512xf32>
    %80 = vector.broadcast %8 : vector<1x512xf32> to vector<8x512xf32>
    %81 = arith.mulf %79, %80 : vector<8x512xf32>
    %c496_i32_21 = arith.constant 496 : i32
    %82 = tpu.dynamic_rotate %62 by %c496_i32_21 dim 1 : vector<8x512xf32>, i32 -> vector<8x512xf32>
    %83 = vector.broadcast %9 : vector<1x512xf32> to vector<8x512xf32>
    %84 = arith.mulf %82, %83 : vector<8x512xf32>
    %c495_i32_22 = arith.constant 495 : i32
    %85 = tpu.dynamic_rotate %62 by %c495_i32_22 dim 1 : vector<8x512xf32>, i32 -> vector<8x512xf32>
    %86 = vector.broadcast %10 : vector<1x512xf32> to vector<8x512xf32>
    %87 = arith.mulf %85, %86 : vector<8x512xf32>
    %88 = tpu.concatenate %66, %69, %72, %75, %62, %78, %81, %84, %87 in 0 : vector<8x512xf32>, vector<8x512xf32>, vector<8x512xf32>, vector<8x512xf32>, vector<8x512xf32>, vector<8x512xf32>, vector<8x512xf32>, vector<8x512xf32>, vector<8x512xf32> -> vector<72x512xf32>
    %cst_23 = arith.constant dense<0.000000e+00> : vector<8x512xf32>
    %89 = tpu.matmul %63, %88, %cst_23 {dimension_numbers = #tpu.dot_dimension_numbers<[1], [0], [0], [1], [0, 0, 1, 1], [], []>} : vector<8x72xf32>, vector<72x512xf32>, vector<8x512xf32> -> vector<8x512xf32>
    %90 = vector.extract_strided_slice %1 {offsets = [0, 2], sizes = [8, 1], strides = [1, 1]} : vector<8x8xf32> to vector<8x1xf32>
    %91 = vector.extract_strided_slice %1 {offsets = [0, 3], sizes = [8, 1], strides = [1, 1]} : vector<8x8xf32> to vector<8x1xf32>
    %cst_24 = arith.constant dense<0.000000e+00> : vector<8xf32>
    %92 = vector.multi_reduction <add>, %89, %cst_24 [1] : vector<8x512xf32> to vector<8xf32>
    %93 = vector.shape_cast %92 : vector<8xf32> to vector<8x1xf32>
    %cst_25 = arith.constant 0.001953125 : f32
    %94 = vector.broadcast %cst_25 : f32 to vector<8x1xf32>
    %95 = arith.mulf %93, %94 : vector<8x1xf32>
    %96 = vector.broadcast %95 : vector<8x1xf32> to vector<8x512xf32>
    %97 = arith.subf %89, %96 : vector<8x512xf32>
    %98 = arith.mulf %97, %97 : vector<8x512xf32>
    %cst_26 = arith.constant dense<0.000000e+00> : vector<8xf32>
    %99 = vector.multi_reduction <add>, %98, %cst_26 [1] : vector<8x512xf32> to vector<8xf32>
    %100 = vector.shape_cast %99 : vector<8xf32> to vector<8x1xf32>
    %cst_27 = arith.constant 0.001953125 : f32
    %101 = vector.broadcast %cst_27 : f32 to vector<8x1xf32>
    %102 = arith.mulf %100, %101 : vector<8x1xf32>
    %cst_28 = arith.constant 9.99999974E-6 : f32
    %103 = vector.broadcast %cst_28 : f32 to vector<8x1xf32>
    %104 = arith.addf %102, %103 : vector<8x1xf32>
    %105 = math.rsqrt %104 : vector<8x1xf32>
    %106 = arith.mulf %105, %90 : vector<8x1xf32>
    %107 = arith.mulf %95, %106 : vector<8x1xf32>
    %108 = arith.subf %91, %107 : vector<8x1xf32>
    %109 = vector.broadcast %106 : vector<8x1xf32> to vector<8x512xf32>
    %110 = arith.mulf %89, %109 : vector<8x512xf32>
    %111 = vector.broadcast %108 : vector<8x1xf32> to vector<8x512xf32>
    %112 = arith.addf %110, %111 : vector<8x512xf32>
    %c0_29 = arith.constant 0 : index
    %c0_30 = arith.constant 0 : index
    %113 = vector.load %arg3[%c0_29, %c0_30] : memref<8x8xf32, #tpu.memory_space<vmem>>, vector<8x8xf32>
    %cst_31 = arith.constant dense<0.000000e+00> : vector<8x512xf32>
    %114 = tpu.matmul %113, %0, %cst_31 {dimension_numbers = #tpu.dot_dimension_numbers<[1], [0], [0], [1], [0, 0, 1, 1], [], []>} : vector<8x8xf32>, vector<8x512xf32>, vector<8x512xf32> -> vector<8x512xf32>
    %115 = vector.extract_strided_slice %1 {offsets = [0, 4], sizes = [8, 1], strides = [1, 1]} : vector<8x8xf32> to vector<8x1xf32>
    %116 = vector.extract_strided_slice %1 {offsets = [0, 5], sizes = [8, 1], strides = [1, 1]} : vector<8x8xf32> to vector<8x1xf32>
    %cst_32 = arith.constant dense<0.000000e+00> : vector<8xf32>
    %117 = vector.multi_reduction <add>, %114, %cst_32 [1] : vector<8x512xf32> to vector<8xf32>
    %118 = vector.shape_cast %117 : vector<8xf32> to vector<8x1xf32>
    %cst_33 = arith.constant 0.001953125 : f32
    %119 = vector.broadcast %cst_33 : f32 to vector<8x1xf32>
    %120 = arith.mulf %118, %119 : vector<8x1xf32>
    %121 = vector.broadcast %120 : vector<8x1xf32> to vector<8x512xf32>
    %122 = arith.subf %114, %121 : vector<8x512xf32>
    %123 = arith.mulf %122, %122 : vector<8x512xf32>
    %cst_34 = arith.constant dense<0.000000e+00> : vector<8xf32>
    %124 = vector.multi_reduction <add>, %123, %cst_34 [1] : vector<8x512xf32> to vector<8xf32>
    %125 = vector.shape_cast %124 : vector<8xf32> to vector<8x1xf32>
    %cst_35 = arith.constant 0.001953125 : f32
    %126 = vector.broadcast %cst_35 : f32 to vector<8x1xf32>
    %127 = arith.mulf %125, %126 : vector<8x1xf32>
    %cst_36 = arith.constant 9.99999974E-6 : f32
    %128 = vector.broadcast %cst_36 : f32 to vector<8x1xf32>
    %129 = arith.addf %127, %128 : vector<8x1xf32>
    %130 = math.rsqrt %129 : vector<8x1xf32>
    %131 = arith.mulf %130, %115 : vector<8x1xf32>
    %132 = arith.mulf %120, %131 : vector<8x1xf32>
    %133 = arith.subf %116, %132 : vector<8x1xf32>
    %134 = vector.broadcast %131 : vector<8x1xf32> to vector<8x512xf32>
    %135 = arith.mulf %114, %134 : vector<8x512xf32>
    %136 = vector.broadcast %133 : vector<8x1xf32> to vector<8x512xf32>
    %137 = arith.addf %135, %136 : vector<8x512xf32>
    %138 = arith.addf %112, %137 : vector<8x512xf32>
    %cst_37 = arith.constant 0.000000e+00 : f32
    %139 = vector.broadcast %cst_37 : f32 to vector<8x512xf32>
    %140 = arith.maximumf %138, %139 : vector<8x512xf32>
    %c0_38 = arith.constant 0 : index
    %c0_39 = arith.constant 0 : index
    %141 = vector.load %arg6[%c0_38, %c0_39] : memref<8x512xf32, #tpu.memory_space<vmem>>, vector<8x512xf32>
    tpu.vector_store %arg6[%c0_38, %c0_39], %140 {strides = array<i32>} : memref<8x512xf32, #tpu.memory_space<vmem>>, vector<8x512xf32>,
    return
  }
}

</mosaic_0001>

<llo_original>
// kernel: tpu_custom_call.1
$region0: #{tpu_custom_call.1}
  #allocation0 [shape = 'u32[]', space=smem, size = 0x4, offset = 0x4, fixed_abs, tag = 'smem constant byte address 0x4 - core index']
  #allocation1 [shape = 'u32[144,128]{1,0:T(1,128)}', space=vmem, size = 0x12000, scoped, tag = 'internal scratch']
  %s0 = inlined_call_operand.hbm [shape: f32[8,512], index: 0, kind: input, shape index: {}]
  %s1 = inlined_call_operand.hbm [shape: f32[8,72], index: 1, kind: input, shape index: {}]
  %s2 = inlined_call_operand.hbm [shape: f32[8,72], index: 2, kind: input, shape index: {}]
  %s3 = inlined_call_operand.vmem [shape: f32[8,8], index: 3, kind: input, shape index: {}]
  %s4 = inlined_call_operand.hbm [shape: f32[8,8], index: 4, kind: input, shape index: {}]
  %s5 = inlined_call_operand.hbm [shape: f32[8,512], index: 5, kind: input, shape index: {}]
  %s6 = inlined_call_operand.hbm [shape: f32[8,512], index: 6, kind: output, shape index: {}]
  %s7 = sld [smem:[#allocation0]]
  $region54: #{tpu_custom_call.1} parent=0
    _
  %s9 = ssub.s32 1, %s7
  %s10 = scalar_select 0, %s9, %s7
  $region1: #{tpu_custom_call.1} parent=0
    #allocation2 [shape = 'u8[16384]{0}', space=vmem, size = 0x4000, scoped, tag = 'input window, operand 0, single buffered']
    #allocation3 [shape = 's32[1]{0}', space=sflag, size = 0x4, scoped, tag = 'scoped memory for tpu_custom_call.1']
    #allocation4 [shape = 's32[1]{0}', space=sflag, size = 0x4, scoped, tag = 'scoped memory for tpu_custom_call.1']
    #allocation5 [shape = 'u8[4096]{0}', space=vmem, size = 0x1000, scoped, tag = 'input window, operand 1, single buffered']
    #allocation6 [shape = 's32[1]{0}', space=sflag, size = 0x4, scoped, tag = 'scoped memory for tpu_custom_call.1']
    #allocation7 [shape = 'u8[4096]{0}', space=vmem, size = 0x1000, scoped, tag = 'input window, operand 2, single buffered']
    #allocation8 [shape = 'u8[4096]{0}', space=vmem, size = 0x1000, scoped, tag = 'input window, operand 4, single buffered']
    #allocation9 [shape = 's32[1]{0}', space=sflag, size = 0x4, scoped, tag = 'scoped memory for tpu_custom_call.1']
    #allocation10 [shape = 'u8[16384]{0}', space=vmem, size = 0x4000, scoped, tag = 'input window, operand 5, single buffered']
    #allocation11 [shape = 'u8[16384]{0}', space=vmem, size = 0x4000, scoped, tag = 'output window, operand 0, single buffered']
    %11 = vsyncpa [#allocation3], 0
    %12 = vsyncpa [#allocation6], 0
    %13 = vsyncpa [#allocation9], 0
    %14 = vsyncpa [#allocation4], 0
    // Predicated region
    $region2: #{tpu_custom_call.1} parent=1 // pred_check
      _
    $region3: #{tpu_custom_call.1} parent=1 // pred_check_branch
      %16 = sbr.rel (0) target = $region5
    $region4: #{tpu_custom_call.1} parent=1 // pred_region
      %s18 = ssub.s32 512, 512
      %19 = vsyncadd [#allocation3], %s18
      %s21 = sshll.u32 [#allocation2], 4
      %s22 = int_to_ptr.vmem [resolvable:$true] %s21
      %24 = dma.hbm_to_vmem [thread:$0]  %s0, 512, %s22, [#allocation3]
    $region5: #{tpu_custom_call.1} parent=1 // pred_fallthru
      _
    // Predicated region
    $region6: #{tpu_custom_call.1} parent=1 // pred_check
      _
    $region7: #{tpu_custom_call.1} parent=1 // pred_check_branch
      %26 = sbr.rel (0) target = $region9
    $region8: #{tpu_custom_call.1} parent=1 // pred_region
      %s28 = ssub.s32 128, 128
      %29 = vsyncadd [#allocation6], %s28
      %s31 = sshll.u32 [#allocation5], 4
      %s32 = int_to_ptr.vmem [resolvable:$true] %s31
      %34 = dma.hbm_to_vmem [thread:$0]  %s1, 128, %s32, [#allocation6]
    $region9: #{tpu_custom_call.1} parent=1 // pred_fallthru
      _
    // Predicated region
    $region10: #{tpu_custom_call.1} parent=1 // pred_check
      _
    $region11: #{tpu_custom_call.1} parent=1 // pred_check_branch
      %36 = sbr.rel (0) target = $region13
    $region12: #{tpu_custom_call.1} parent=1 // pred_region
      %s38 = ssub.s32 128, 128
      %39 = vsyncadd [#allocation6], %s38
      %s41 = sshll.u32 [#allocation7], 4
      %s42 = int_to_ptr.vmem [resolvable:$true] %s41
      %44 = dma.hbm_to_vmem [thread:$0]  %s2, 128, %s42, [#allocation6]
    $region13: #{tpu_custom_call.1} parent=1 // pred_fallthru
      _
    // Predicated region
    $region14: #{tpu_custom_call.1} parent=1 // pred_check
      _
    $region15: #{tpu_custom_call.1} parent=1 // pred_check_branch
      %46 = sbr.rel (0) target = $region17
    $region16: #{tpu_custom_call.1} parent=1 // pred_region
      _
    $region17: #{tpu_custom_call.1} parent=1 // pred_fallthru
      _
    // Predicated region
    $region18: #{tpu_custom_call.1} parent=1 // pred_check
      _
    $region19: #{tpu_custom_call.1} parent=1 // pred_check_branch
      %48 = sbr.rel (0) target = $region21
    $region20: #{tpu_custom_call.1} parent=1 // pred_region
      %s50 = ssub.s32 128, 128
      %51 = vsyncadd [#allocation9], %s50
      %s53 = sshll.u32 [#allocation8], 4
      %s54 = int_to_ptr.vmem [resolvable:$true] %s53
      %56 = dma.hbm_to_vmem [thread:$0]  %s4, 128, %s54, [#allocation9]
    $region21: #{tpu_custom_call.1} parent=1 // pred_fallthru
      _
    // Predicated region
    $region22: #{tpu_custom_call.1} parent=1 // pred_check
      _
    $region23: #{tpu_custom_call.1} parent=1 // pred_check_branch
      %58 = sbr.rel (0) target = $region25
    $region24: #{tpu_custom_call.1} parent=1 // pred_region
      %s60 = ssub.s32 512, 512
      %61 = vsyncadd [#allocation9], %s60
      %s63 = sshll.u32 [#allocation10], 4
      %s64 = int_to_ptr.vmem [resolvable:$true] %s63
      %66 = dma.hbm_to_vmem [thread:$0]  %s5, 512, %s64, [#allocation9]
    $region25: #{tpu_custom_call.1} parent=1 // pred_fallthru
      _
    // Predicated region
    $region26: #{tpu_custom_call.1} parent=1 // pred_check
      _
    $region27: #{tpu_custom_call.1} parent=1 // pred_check_branch
      %68 = sbr.rel (0) target = $region29
    $region28: #{tpu_custom_call.1} parent=1 // pred_region
      %69 = dma.done [#allocation3], 512
    $region29: #{tpu_custom_call.1} parent=1 // pred_fallthru
      _
    // Predicated region
    $region30: #{tpu_custom_call.1} parent=1 // pred_check
      _
    $region31: #{tpu_custom_call.1} parent=1 // pred_check_branch
      %71 = sbr.rel (0) target = $region33
    $region32: #{tpu_custom_call.1} parent=1 // pred_region
      %72 = dma.done [#allocation6], 128
    $region33: #{tpu_custom_call.1} parent=1 // pred_fallthru
      _
    // Predicated region
    $region34: #{tpu_custom_call.1} parent=1 // pred_check
      _
    $region35: #{tpu_custom_call.1} parent=1 // pred_check_branch
      %74 = sbr.rel (0) target = $region37
    $region36: #{tpu_custom_call.1} parent=1 // pred_region
      %75 = dma.done [#allocation6], 128
    $region37: #{tpu_custom_call.1} parent=1 // pred_fallthru
      _
    // Predicated region
    $region38: #{tpu_custom_call.1} parent=1 // pred_check
      _
    $region39: #{tpu_custom_call.1} parent=1 // pred_check_branch
      %77 = sbr.rel (0) target = $region41
    $region40: #{tpu_custom_call.1} parent=1 // pred_region
      %78 = dma.done [#allocation9], 128
    $region41: #{tpu_custom_call.1} parent=1 // pred_fallthru
      _
    // Predicated region
    $region42: #{tpu_custom_call.1} parent=1 // pred_check
      _
    $region43: #{tpu_custom_call.1} parent=1 // pred_check_branch
      %80 = sbr.rel (0) target = $region45
    $region44: #{tpu_custom_call.1} parent=1 // pred_region
      %81 = dma.done [#allocation9], 512
    $region45: #{tpu_custom_call.1} parent=1 // pred_fallthru
      _
    %v82 = vld [vmem:[#allocation2] sm:$0xff]
    %v83 = vld [vmem:[#allocation2 + $0x8] sm:$0xff]
    %v84 = vld [vmem:[#allocation2 + $0x10] sm:$0xff]
    %v85 = vld [vmem:[#allocation2 + $0x18] sm:$0xff]
    %v86 = vld [vmem:[#allocation8] sm:$0xff]
    %v87 = vld [vmem:[#allocation10] sm:$0xff]
    %v88 = vld [vmem:[#allocation10 + $0x8] sm:$0xff]
    %v89 = vld [vmem:[#allocation10 + $0x10] sm:$0xff]
    %v90 = vld [vmem:[#allocation10 + $0x18] sm:$0xff]
    %v91 = vld [vmem:[#allocation5] sm:$0xff]
    %92 = vrot.lane.b32.xlu0 %v82, 17
    %v93 = vpop.permute.xlu0 %92
    %94 = vrot.lane.b32.xlu0 %v83, 17
    %v95 = vpop.permute.xlu0 %94
    %96 = vrot.lane.b32.xlu0 %v84, 17
    %v97 = vpop.permute.xlu0 %96
    %98 = vrot.lane.b32.xlu0 %v85, 17
    %v99 = vpop.permute.xlu0 %98
    %v100 = vlaneseq
    %v101 = vand.u32 %v100, 127
    %vm102 = vcmp.lt.s32.totalorder %v101, 17
    %v103 = vsel %vm102, %v97, %v99
    %v104 = vsel %vm102, %v95, %v97
    %v105 = vsel %vm102, %v93, %v95
    %v106 = vsel %vm102, %v99, %v93
    %v107 = vlaneseq
    %v108 = vshrl.u32 %v107, 7
    %v109 = vsub.s32 0, %v108
    %v110 = vrot.slane %v87, %v109
    %v111 = vlaneseq
    %v112 = vshrl.u32 %v111, 7
    %v113 = vsub.s32 0, %v112
    %v114 = vrot.slane %v88, %v113
    %v115 = vlaneseq
    %v116 = vshrl.u32 %v115, 7
    %v117 = vsub.s32 0, %v116
    %v118 = vrot.slane %v89, %v117
    %v119 = vlaneseq
    %v120 = vshrl.u32 %v119, 7
    %v121 = vsub.s32 0, %v120
    %v122 = vrot.slane %v90, %v121
    %v123 = vmul.f32 %v106, %v110
    %v124 = vmul.f32 %v105, %v114
    %v125 = vmul.f32 %v104, %v118
    %v126 = vmul.f32 %v103, %v122
    %127 = vrot.lane.b32.xlu0 %v82, 16
    %v128 = vpop.permute.xlu0 %127
    %129 = vrot.lane.b32.xlu0 %v83, 16
    %v130 = vpop.permute.xlu0 %129
    %131 = vrot.lane.b32.xlu0 %v84, 16
    %v132 = vpop.permute.xlu0 %131
    %133 = vrot.lane.b32.xlu0 %v85, 16
    %v134 = vpop.permute.xlu0 %133
    %vm135 = vcmp.lt.s32.totalorder %v101, 16
    %v136 = vsel %vm135, %v132, %v134
    %v137 = vsel %vm135, %v130, %v132
    %v138 = vsel %vm135, %v128, %v130
    %v139 = vsel %vm135, %v134, %v128
    %v140 = vlaneseq
    %v141 = vshrl.u32 %v140, 7
    %v142 = vsub.s32 1, %v141
    %v143 = vrot.slane %v87, %v142
    %v144 = vlaneseq
    %v145 = vshrl.u32 %v144, 7
    %v146 = vsub.s32 1, %v145
    %v147 = vrot.slane %v88, %v146
    %v148 = vlaneseq
    %v149 = vshrl.u32 %v148, 7
    %v150 = vsub.s32 1, %v149
    %v151 = vrot.slane %v89, %v150
    %v152 = vlaneseq
    %v153 = vshrl.u32 %v152, 7
    %v154 = vsub.s32 1, %v153
    %v155 = vrot.slane %v90, %v154
    %v156 = vmul.f32 %v139, %v143
    %v157 = vmul.f32 %v138, %v147
    %v158 = vmul.f32 %v137, %v151
    %v159 = vmul.f32 %v136, %v155
    %160 = vrot.lane.b32.xlu0 %v82, 15
    %v161 = vpop.permute.xlu0 %160
    %162 = vrot.lane.b32.xlu0 %v83, 15
    %v163 = vpop.permute.xlu0 %162
    %164 = vrot.lane.b32.xlu0 %v84, 15
    %v165 = vpop.permute.xlu0 %164
    %166 = vrot.lane.b32.xlu0 %v85, 15
    %v167 = vpop.permute.xlu0 %166
    %vm168 = vcmp.lt.s32.totalorder %v101, 15
    %v169 = vsel %vm168, %v165, %v167
    %v170 = vsel %vm168, %v163, %v165
    %v171 = vsel %vm168, %v161, %v163
    %v172 = vsel %vm168, %v167, %v161
    %v173 = vlaneseq
    %v174 = vshrl.u32 %v173, 7
    %v175 = vsub.s32 2, %v174
    %v176 = vrot.slane %v87, %v175
    %v177 = vlaneseq
    %v178 = vshrl.u32 %v177, 7
    %v179 = vsub.s32 2, %v178
    %v180 = vrot.slane %v88, %v179
    %v181 = vlaneseq
    %v182 = vshrl.u32 %v181, 7
    %v183 = vsub.s32 2, %v182
    %v184 = vrot.slane %v89, %v183
    %v185 = vlaneseq
    %v186 = vshrl.u32 %v185, 7
    %v187 = vsub.s32 2, %v186
    %v188 = vrot.slane %v90, %v187
    %v189 = vmul.f32 %v172, %v176
    %v190 = vmul.f32 %v171, %v180
    %v191 = vmul.f32 %v170, %v184
    %v192 = vmul.f32 %v169, %v188
    %193 = vrot.lane.b32.xlu0 %v82, 1
    %v194 = vpop.permute.xlu0 %193
    %195 = vrot.lane.b32.xlu0 %v83, 1
    %v196 = vpop.permute.xlu0 %195
    %197 = vrot.lane.b32.xlu0 %v84, 1
    %v198 = vpop.permute.xlu0 %197
    %199 = vrot.lane.b32.xlu0 %v85, 1
    %v200 = vpop.permute.xlu0 %199
    %vm201 = vcmp.lt.s32.totalorder %v101, 1
    %v202 = vsel %vm201, %v198, %v200
    %v203 = vsel %vm201, %v196, %v198
    %v204 = vsel %vm201, %v194, %v196
    %v205 = vsel %vm201, %v200, %v194
    %v206 = vlaneseq
    %v207 = vshrl.u32 %v206, 7
    %v208 = vsub.s32 3, %v207
    %v209 = vrot.slane %v87, %v208
    %v210 = vlaneseq
    %v211 = vshrl.u32 %v210, 7
    %v212 = vsub.s32 3, %v211
    %v213 = vrot.slane %v88, %v212
    %v214 = vlaneseq
    %v215 = vshrl.u32 %v214, 7
    %v216 = vsub.s32 3, %v215
    %v217 = vrot.slane %v89, %v216
    %v218 = vlaneseq
    %v219 = vshrl.u32 %v218, 7
    %v220 = vsub.s32 3, %v219
    %v221 = vrot.slane %v90, %v220
    %v222 = vmul.f32 %v205, %v209
    %v223 = vmul.f32 %v204, %v213
    %v224 = vmul.f32 %v203, %v217
    %v225 = vmul.f32 %v202, %v221
    %226 = vrot.lane.b32.xlu0 %v82, 127
    %v227 = vpop.permute.xlu0 %226
    %228 = vrot.lane.b32.xlu0 %v83, 127
    %v229 = vpop.permute.xlu0 %228
    %230 = vrot.lane.b32.xlu0 %v84, 127
    %v231 = vpop.permute.xlu0 %230
    %232 = vrot.lane.b32.xlu0 %v85, 127
    %v233 = vpop.permute.xlu0 %232
    %vm234 = vcmp.lt.s32.totalorder %v101, 127
    %v235 = vsel %vm234, %v231, %v233
    %v236 = vsel %vm234, %v229, %v231
    %v237 = vsel %vm234, %v227, %v229
    %v238 = vsel %vm234, %v233, %v227
    %v239 = vlaneseq
    %v240 = vshrl.u32 %v239, 7
    %v241 = vsub.s32 4, %v240
    %v242 = vrot.slane %v87, %v241
    %v243 = vlaneseq
    %v244 = vshrl.u32 %v243, 7
    %v245 = vsub.s32 4, %v244
    %v246 = vrot.slane %v88, %v245
    %v247 = vlaneseq
    %v248 = vshrl.u32 %v247, 7
    %v249 = vsub.s32 4, %v248
    %v250 = vrot.slane %v89, %v249
    %v251 = vlaneseq
    %v252 = vshrl.u32 %v251, 7
    %v253 = vsub.s32 4, %v252
    %v254 = vrot.slane %v90, %v253
    %v255 = vmul.f32 %v237, %v242
    %v256 = vmul.f32 %v236, %v246
    %v257 = vmul.f32 %v235, %v250
    %v258 = vmul.f32 %v238, %v254
    %259 = vrot.lane.b32.xlu0 %v82, 113
    %v260 = vpop.permute.xlu0 %259
    %261 = vrot.lane.b32.xlu0 %v83, 113
    %v262 = vpop.permute.xlu0 %261
    %263 = vrot.lane.b32.xlu0 %v84, 113
    %v264 = vpop.permute.xlu0 %263
    %265 = vrot.lane.b32.xlu0 %v85, 113
    %v266 = vpop.permute.xlu0 %265
    %vm267 = vcmp.lt.s32.totalorder %v101, 113
    %v268 = vsel %vm267, %v264, %v266
    %v269 = vsel %vm267, %v262, %v264
    %v270 = vsel %vm267, %v260, %v262
    %v271 = vsel %vm267, %v266, %v260
    %v272 = vlaneseq
    %v273 = vshrl.u32 %v272, 7
    %v274 = vsub.s32 5, %v273
    %v275 = vrot.slane %v87, %v274
    %v276 = vlaneseq
    %v277 = vshrl.u32 %v276, 7
    %v278 = vsub.s32 5, %v277
    %v279 = vrot.slane %v88, %v278
    %v280 = vlaneseq
    %v281 = vshrl.u32 %v280, 7
    %v282 = vsub.s32 5, %v281
    %v283 = vrot.slane %v89, %v282
    %v284 = vlaneseq
    %v285 = vshrl.u32 %v284, 7
    %v286 = vsub.s32 5, %v285
    %v287 = vrot.slane %v90, %v286
    %v288 = vmul.f32 %v270, %v275
    %v289 = vmul.f32 %v269, %v279
    %v290 = vmul.f32 %v268, %v283
    %v291 = vmul.f32 %v271, %v287
    %292 = vrot.lane.b32.xlu0 %v82, 112
    %v293 = vpop.permute.xlu0 %292
    %294 = vrot.lane.b32.xlu0 %v83, 112
    %v295 = vpop.permute.xlu0 %294
    %296 = vrot.lane.b32.xlu0 %v84, 112
    %v297 = vpop.permute.xlu0 %296
    %298 = vrot.lane.b32.xlu0 %v85, 112
    %v299 = vpop.permute.xlu0 %298
    %vm300 = vcmp.lt.s32.totalorder %v101, 112
    %v301 = vsel %vm300, %v297, %v299
    %v302 = vsel %vm300, %v295, %v297
    %v303 = vsel %vm300, %v293, %v295
    %v304 = vsel %vm300, %v299, %v293
    %v305 = vlaneseq
    %v306 = vshrl.u32 %v305, 7
    %v307 = vsub.s32 6, %v306
    %v308 = vrot.slane %v87, %v307
    %v309 = vlaneseq
    %v310 = vshrl.u32 %v309, 7
    %v311 = vsub.s32 6, %v310
    %v312 = vrot.slane %v88, %v311
    %v313 = vlaneseq
    %v314 = vshrl.u32 %v313, 7
    %v315 = vsub.s32 6, %v314
    %v316 = vrot.slane %v89, %v315
    %v317 = vlaneseq
    %v318 = vshrl.u32 %v317, 7
    %v319 = vsub.s32 6, %v318
    %v320 = vrot.slane %v90, %v319
    %v321 = vmul.f32 %v303, %v308
    %v322 = vmul.f32 %v302, %v312
    %v323 = vmul.f32 %v301, %v316
    %v324 = vmul.f32 %v304, %v320
    %325 = vrot.lane.b32.xlu0 %v82, 111
    %v326 = vpop.permute.xlu0 %325
    %327 = vrot.lane.b32.xlu0 %v83, 111
    %v328 = vpop.permute.xlu0 %327
    %329 = vrot.lane.b32.xlu0 %v84, 111
    %v330 = vpop.permute.xlu0 %329
    %331 = vrot.lane.b32.xlu0 %v85, 111
    %v332 = vpop.permute.xlu0 %331
    %vm333 = vcmp.lt.s32.totalorder %v101, 111
    %v334 = vsel %vm333, %v330, %v332
    %v335 = vsel %vm333, %v328, %v330
    %v336 = vsel %vm333, %v326, %v328
    %v337 = vsel %vm333, %v332, %v326
    %v338 = vlaneseq
    %v339 = vshrl.u32 %v338, 7
    %v340 = vsub.s32 7, %v339
    %v341 = vrot.slane %v87, %v340
    %v342 = vlaneseq
    %v343 = vshrl.u32 %v342, 7
    %v344 = vsub.s32 7, %v343
    %v345 = vrot.slane %v88, %v344
    %v346 = vlaneseq
    %v347 = vshrl.u32 %v346, 7
    %v348 = vsub.s32 7, %v347
    %v349 = vrot.slane %v89, %v348
    %v350 = vlaneseq
    %v351 = vshrl.u32 %v350, 7
    %v352 = vsub.s32 7, %v351
    %v353 = vrot.slane %v90, %v352
    %v354 = vmul.f32 %v336, %v341
    %v355 = vmul.f32 %v335, %v345
    %v356 = vmul.f32 %v334, %v349
    %v357 = vmul.f32 %v337, %v353
    %vm358 = vcmask 588800
    %v360 = vsel %vm358, %v91, 0
    %362 = vmatprep.subr.mxu0 %v124
    %363 = vmatpush1.msra.mxu0 %v123
    %364 = vmatprep.subr.mxu0 %v157
    %365 = vmatpush1.msra.mxu0 %v156
    %366 = vmatprep.subr.mxu0 %v190
    %367 = vmatpush1.msra.mxu0 %v189
    %368 = vmatprep.subr.mxu0 %v223
    %369 = vmatpush1.msra.mxu0 %v222
    %370 = vmatprep.subr.mxu0 %v83
    %371 = vmatpush1.msra.mxu0 %v82
    %372 = vmatprep.subr.mxu0 %v256
    %373 = vmatpush1.msra.mxu0 %v255
    %374 = vmatprep.subr.mxu0 %v289
    %375 = vmatpush1.msra.mxu0 %v288
    %376 = vmatprep.subr.mxu0 %v322
    %377 = vmatpush1.msra.mxu0 %v321
    %378 = vmatprep.subr.mxu0 %v355
    %379 = vmatpush1.msra.mxu0 %v354
    %380 = vmatprep.subr.mxu0 0.0
    %381 = vmatpush1.msra.mxu0 0.0
    %382 = vmatprep.subr.mxu0 0.0
    %383 = vmatpush1.msra.mxu0 0.0
    %384 = vmatprep.subr.mxu0 0.0
    %385 = vmatpush1.msra.mxu0 0.0
    %386 = vmatprep.subr.mxu0 0.0
    %387 = vmatpush1.msra.mxu0 0.0
    %388 = vmatprep.subr.mxu0 0.0
    %389 = vmatpush1.msra.mxu0 0.0
    %390 = vmatprep.subr.mxu0 0.0
    %391 = vmatpush1.msra.mxu0 0.0
    %392 = vmatprep.subr.mxu0 0.0
    %393 = vmatpush1.msra.mxu0 0.0
    %394 = vmatprep.subr.mxu0 0.0
    %395 = vmatpush1.msra.mxu0 0.0
    %396 = vmatprep.subr.mxu0 0.0
    %397 = vmatpush1.msra.mxu0 0.0
    %398 = vmatprep.subr.mxu0 0.0
    %399 = vmatpush1.msra.mxu0 0.0
    %400 = vmatprep.subr.mxu0 0.0
    %401 = vmatpush1.msra.mxu0 0.0
    %402 = vmatprep.subr.mxu0 0.0
    %403 = vmatpush1.msra.mxu0 0.0
    %404 = vmatprep.subr.mxu0 0.0
    %405 = vmatpush1.msra.mxu0 0.0
    %406 = vmatprep.subr.mxu0 0.0
    %407 = vmatpush1.msra.mxu0 0.0
    %408 = vmatprep.subr.mxu0 0.0
    %409 = vmatpush1.msra.mxu0 0.0
    %410 = vmatprep.subr.mxu0 0.0
    %411 = vmatpush1.msra.mxu0 0.0
    %412 = vmatprep.subr.mxu0 0.0
    %413 = vmatpush1.msra.mxu0 0.0
    %414 = vmatprep.subr.mxu0 0.0
    %415 = vmatpush1.msra.mxu0 0.0
    %416 = vmatprep.subr.mxu0 0.0
    %417 = vmatpush1.msra.mxu0 0.0
    %418 = vmatprep.subr.mxu0 0.0
    %419 = vmatpush1.msra.mxu0 0.0
    %420 = vmatprep.subr.mxu0 0.0
    %421 = vmatpush1.msra.mxu0 0.0
    %422 = vmatprep.subr.mxu0 0.0
    %423 = vmatpush1.msra.mxu0 0.0
    %424 = vmatprep.subr.mxu0 0.0
    %425 = vmatpush1.msra.mxu0 0.0
    %426 = vmatprep.mubr.f32.mxu0 0.0
    %427 = vmatmul.mubr.f32.gmra.mrb[0].mxu0 %v360
    %v428 = vpop.f32.mrb[0].mxu0
    %v429 = vadd.f32 0.0, %v428
    %v430 = vpop.f32.mrb[0].mxu0
    %v431 = vadd.f32 0.0, %v430
    %432 = vdwg.mxu0
    %433 = vmatprep.subr.mxu0 %v126
    %434 = vmatpush1.msra.mxu0 %v125
    %435 = vmatprep.subr.mxu0 %v159
    %436 = vmatpush1.msra.mxu0 %v158
    %437 = vmatprep.subr.mxu0 %v192
    %438 = vmatpush1.msra.mxu0 %v191
    %439 = vmatprep.subr.mxu0 %v225
    %440 = vmatpush1.msra.mxu0 %v224
    %441 = vmatprep.subr.mxu0 %v85
    %442 = vmatpush1.msra.mxu0 %v84
    %443 = vmatprep.subr.mxu0 %v258
    %444 = vmatpush1.msra.mxu0 %v257
    %445 = vmatprep.subr.mxu0 %v291
    %446 = vmatpush1.msra.mxu0 %v290
    %447 = vmatprep.subr.mxu0 %v324
    %448 = vmatpush1.msra.mxu0 %v323
    %449 = vmatprep.subr.mxu0 %v357
    %450 = vmatpush1.msra.mxu0 %v356
    %451 = vmatprep.subr.mxu0 0.0
    %452 = vmatpush1.msra.mxu0 0.0
    %453 = vmatprep.subr.mxu0 0.0
    %454 = vmatpush1.msra.mxu0 0.0
    %455 = vmatprep.subr.mxu0 0.0
    %456 = vmatpush1.msra.mxu0 0.0
    %457 = vmatprep.subr.mxu0 0.0
    %458 = vmatpush1.msra.mxu0 0.0
    %459 = vmatprep.subr.mxu0 0.0
    %460 = vmatpush1.msra.mxu0 0.0
    %461 = vmatprep.subr.mxu0 0.0
    %462 = vmatpush1.msra.mxu0 0.0
    %463 = vmatprep.subr.mxu0 0.0
    %464 = vmatpush1.msra.mxu0 0.0
    %465 = vmatprep.subr.mxu0 0.0
    %466 = vmatpush1.msra.mxu0 0.0
    %467 = vmatprep.subr.mxu0 0.0
    %468 = vmatpush1.msra.mxu0 0.0
    %469 = vmatprep.subr.mxu0 0.0
    %470 = vmatpush1.msra.mxu0 0.0
    %471 = vmatprep.subr.mxu0 0.0
    %472 = vmatpush1.msra.mxu0 0.0
    %473 = vmatprep.subr.mxu0 0.0
    %474 = vmatpush1.msra.mxu0 0.0
    %475 = vmatprep.subr.mxu0 0.0
    %476 = vmatpush1.msra.mxu0 0.0
    %477 = vmatprep.subr.mxu0 0.0
    %478 = vmatpush1.msra.mxu0 0.0
    %479 = vmatprep.subr.mxu0 0.0
    %480 = vmatpush1.msra.mxu0 0.0
    %481 = vmatprep.subr.mxu0 0.0
    %482 = vmatpush1.msra.mxu0 0.0
    %483 = vmatprep.subr.mxu0 0.0
    %484 = vmatpush1.msra.mxu0 0.0
    %485 = vmatprep.subr.mxu0 0.0
    %486 = vmatpush1.msra.mxu0 0.0
    %487 = vmatprep.subr.mxu0 0.0
    %488 = vmatpush1.msra.mxu0 0.0
    %489 = vmatprep.subr.mxu0 0.0
    %490 = vmatpush1.msra.mxu0 0.0
    %491 = vmatprep.subr.mxu0 0.0
    %492 = vmatpush1.msra.mxu0 0.0
    %493 = vmatprep.subr.mxu0 0.0
    %494 = vmatpush1.msra.mxu0 0.0
    %495 = vmatprep.subr.mxu0 0.0
    %496 = vmatpush1.msra.mxu0 0.0
    %497 = vmatprep.mubr.f32.mxu0 0.0
    %498 = vmatmul.mubr.f32.gmra.mrb[0].mxu0 %v360
    %v499 = vpop.f32.mrb[0].mxu0
    %v500 = vadd.f32 0.0, %v499
    %v501 = vpop.f32.mrb[0].mxu0
    %v502 = vadd.f32 0.0, %v501
    %503 = vdwg.mxu0
    %v504 = vadd.f32 %v429, %v431
    %v505 = vadd.f32 %v504, %v500
    %v506 = vadd.f32 %v505, %v502
    %507 = vadd.xlane.f32.xlu0 %v506
    %v508 = vpop.xlane.xlu0 %507
    %v509 = vmul.f32 %v508, 0.001953125
    %v510 = vsub.f32 %v429, %v509
    %v511 = vsub.f32 %v431, %v509
    %v512 = vsub.f32 %v500, %v509
    %v513 = vsub.f32 %v502, %v509
    %v514 = vmul.f32 %v510, %v510
    %v515 = vmul.f32 %v511, %v511
    %v516 = vmul.f32 %v512, %v512
    %v517 = vmul.f32 %v513, %v513
    %v518 = vadd.f32 %v514, %v515
    %v519 = vadd.f32 %v518, %v516
    %v520 = vadd.f32 %v519, %v517
    %521 = vadd.xlane.f32.xlu0 %v520
    %v522 = vpop.xlane.xlu0 %521
    %v523 = vmul.f32 %v522, 0.001953125
    %v524 = vadd.f32 %v523, 1e-05
    %v525 = vrsqrt.pop %v524
    %v526 = vmul.f32 %v525, %v86
    %v527 = vmul.f32 %v509, %v526
    %529 = vrot.lane.b32.xlu0 %v527, 1
    %v530 = vpop.permute.xlu0 %529
    %v532 = vsub.f32 %v86, %v530
    %534 = vset.pattern.permute.xlu0 0
    %535 = vperm.xlu0 %534, %v526
    %v536 = vpop.permute.xlu0 %535
    %v538 = vmul.f32 %v429, %v536
    %v539 = vmul.f32 %v431, %v536
    %v540 = vmul.f32 %v500, %v536
    %v541 = vmul.f32 %v502, %v536
    %543 = vset.pattern.permute.xlu0 1
    %544 = vperm.xlu0 %543, %v532
    %v545 = vpop.permute.xlu0 %544
    %v547 = vadd.f32 %v538, %v545
    %v548 = vadd.f32 %v539, %v545
    %v549 = vadd.f32 %v540, %v545
    %v550 = vadd.f32 %v541, %v545
    %v551 = vmax.f32 %v547, 0.0
    %v552 = vmax.f32 %v548, 0.0
    %v553 = vmax.f32 %v549, 0.0
    %v554 = vmax.f32 %v550, 0.0
    %v555 = vld [vmem:[#allocation7] sm:$0xff]
    %556 = vrot.lane.b32.xlu0 %v551, 17
    %v557 = vpop.permute.xlu0 %556
    %558 = vrot.lane.b32.xlu0 %v552, 17
    %v559 = vpop.permute.xlu0 %558
    %560 = vrot.lane.b32.xlu0 %v553, 17
    %v561 = vpop.permute.xlu0 %560
    %562 = vrot.lane.b32.xlu0 %v554, 17
    %v563 = vpop.permute.xlu0 %562
    %v564 = vsel %vm102, %v561, %v563
    %v565 = vsel %vm102, %v559, %v561
    %v566 = vsel %vm102, %v557, %v559
    %v567 = vsel %vm102, %v563, %v557
    %v568 = vmul.f32 %v567, %v110
    %v569 = vmul.f32 %v566, %v114
    %v570 = vmul.f32 %v565, %v118
    %v571 = vmul.f32 %v564, %v122
    %572 = vrot.lane.b32.xlu0 %v551, 16
    %v573 = vpop.permute.xlu0 %572
    %574 = vrot.lane.b32.xlu0 %v552, 16
    %v575 = vpop.permute.xlu0 %574
    %576 = vrot.lane.b32.xlu0 %v553, 16
    %v577 = vpop.permute.xlu0 %576
    %578 = vrot.lane.b32.xlu0 %v554, 16
    %v579 = vpop.permute.xlu0 %578
    %v580 = vsel %vm135, %v577, %v579
    %v581 = vsel %vm135, %v575, %v577
    %v582 = vsel %vm135, %v573, %v575
    %v583 = vsel %vm135, %v579, %v573
    %v584 = vmul.f32 %v583, %v143
    %v585 = vmul.f32 %v582, %v147
    %v586 = vmul.f32 %v581, %v151
    %v587 = vmul.f32 %v580, %v155
    %588 = vrot.lane.b32.xlu0 %v551, 15
    %v589 = vpop.permute.xlu0 %588
    %590 = vrot.lane.b32.xlu0 %v552, 15
    %v591 = vpop.permute.xlu0 %590
    %592 = vrot.lane.b32.xlu0 %v553, 15
    %v593 = vpop.permute.xlu0 %592
    %594 = vrot.lane.b32.xlu0 %v554, 15
    %v595 = vpop.permute.xlu0 %594
    %v596 = vsel %vm168, %v593, %v595
    %v597 = vsel %vm168, %v591, %v593
    %v598 = vsel %vm168, %v589, %v591
    %v599 = vsel %vm168, %v595, %v589
    %v600 = vmul.f32 %v599, %v176
    %v601 = vmul.f32 %v598, %v180
    %v602 = vmul.f32 %v597, %v184
    %v603 = vmul.f32 %v596, %v188
    %604 = vrot.lane.b32.xlu0 %v551, 1
    %v605 = vpop.permute.xlu0 %604
    %606 = vrot.lane.b32.xlu0 %v552, 1
    %v607 = vpop.permute.xlu0 %606
    %608 = vrot.lane.b32.xlu0 %v553, 1
    %v609 = vpop.permute.xlu0 %608
    %610 = vrot.lane.b32.xlu0 %v554, 1
    %v611 = vpop.permute.xlu0 %610
    %v612 = vsel %vm201, %v609, %v611
    %v613 = vsel %vm201, %v607, %v609
    %v614 = vsel %vm201, %v605, %v607
    %v615 = vsel %vm201, %v611, %v605
    %v616 = vmul.f32 %v615, %v209
    %v617 = vmul.f32 %v614, %v213
    %v618 = vmul.f32 %v613, %v217
    %v619 = vmul.f32 %v612, %v221
    %620 = vrot.lane.b32.xlu0 %v551, 127
    %v621 = vpop.permute.xlu0 %620
    %622 = vrot.lane.b32.xlu0 %v552, 127
    %v623 = vpop.permute.xlu0 %622
    %624 = vrot.lane.b32.xlu0 %v553, 127
    %v625 = vpop.permute.xlu0 %624
    %626 = vrot.lane.b32.xlu0 %v554, 127
    %v627 = vpop.permute.xlu0 %626
    %v628 = vsel %vm234, %v625, %v627
    %v629 = vsel %vm234, %v623, %v625
    %v630 = vsel %vm234, %v621, %v623
    %v631 = vsel %vm234, %v627, %v621
    %v632 = vmul.f32 %v630, %v242
    %v633 = vmul.f32 %v629, %v246
    %v634 = vmul.f32 %v628, %v250
    %v635 = vmul.f32 %v631, %v254
    %636 = vrot.lane.b32.xlu0 %v551, 113
    %v637 = vpop.permute.xlu0 %636
    %638 = vrot.lane.b32.xlu0 %v552, 113
    %v639 = vpop.permute.xlu0 %638
    %640 = vrot.lane.b32.xlu0 %v553, 113
    %v641 = vpop.permute.xlu0 %640
    %642 = vrot.lane.b32.xlu0 %v554, 113
    %v643 = vpop.permute.xlu0 %642
    %v644 = vsel %vm267, %v641, %v643
    %v645 = vsel %vm267, %v639, %v641
    %v646 = vsel %vm267, %v637, %v639
    %v647 = vsel %vm267, %v643, %v637
    %v648 = vmul.f32 %v646, %v275
    %v649 = vmul.f32 %v645, %v279
    %v650 = vmul.f32 %v644, %v283
    %v651 = vmul.f32 %v647, %v287
    %652 = vrot.lane.b32.xlu0 %v551, 112
    %v653 = vpop.permute.xlu0 %652
    %654 = vrot.lane.b32.xlu0 %v552, 112
    %v655 = vpop.permute.xlu0 %654
    %656 = vrot.lane.b32.xlu0 %v553, 112
    %v657 = vpop.permute.xlu0 %656
    %658 = vrot.lane.b32.xlu0 %v554, 112
    %v659 = vpop.permute.xlu0 %658
    %v660 = vsel %vm300, %v657, %v659
    %v661 = vsel %vm300, %v655, %v657
    %v662 = vsel %vm300, %v653, %v655
    %v663 = vsel %vm300, %v659, %v653
    %v664 = vmul.f32 %v662, %v308
    %v665 = vmul.f32 %v661, %v312
    %v666 = vmul.f32 %v660, %v316
    %v667 = vmul.f32 %v663, %v320
    %668 = vrot.lane.b32.xlu0 %v551, 111
    %v669 = vpop.permute.xlu0 %668
    %670 = vrot.lane.b32.xlu0 %v552, 111
    %v671 = vpop.permute.xlu0 %670
    %672 = vrot.lane.b32.xlu0 %v553, 111
    %v673 = vpop.permute.xlu0 %672
    %674 = vrot.lane.b32.xlu0 %v554, 111
    %v675 = vpop.permute.xlu0 %674
    %v676 = vsel %vm333, %v673, %v675
    %v677 = vsel %vm333, %v671, %v673
    %v678 = vsel %vm333, %v669, %v671
    %v679 = vsel %vm333, %v675, %v669
    %v680 = vmul.f32 %v678, %v341
    %v681 = vmul.f32 %v677, %v345
    %v682 = vmul.f32 %v676, %v349
    %v683 = vmul.f32 %v679, %v353
    %v685 = vsel %vm358, %v555, 0
    %687 = vmatprep.subr.mxu0 %v569
    %688 = vmatpush1.msra.mxu0 %v568
    %689 = vmatprep.subr.mxu0 %v585
    %690 = vmatpush1.msra.mxu0 %v584
    %691 = vmatprep.subr.mxu0 %v601
    %692 = vmatpush1.msra.mxu0 %v600
    %693 = vmatprep.subr.mxu0 %v617
    %694 = vmatpush1.msra.mxu0 %v616
    %695 = vmatprep.subr.mxu0 %v552
    %696 = vmatpush1.msra.mxu0 %v551
    %697 = vmatprep.subr.mxu0 %v633
    %698 = vmatpush1.msra.mxu0 %v632
    %699 = vmatprep.subr.mxu0 %v649
    %700 = vmatpush1.msra.mxu0 %v648
    %701 = vmatprep.subr.mxu0 %v665
    %702 = vmatpush1.msra.mxu0 %v664
    %703 = vmatprep.subr.mxu0 %v681
    %704 = vmatpush1.msra.mxu0 %v680
    %705 = vmatprep.subr.mxu0 0.0
    %706 = vmatpush1.msra.mxu0 0.0
    %707 = vmatprep.subr.mxu0 0.0
    %708 = vmatpush1.msra.mxu0 0.0
    %709 = vmatprep.subr.mxu0 0.0
    %710 = vmatpush1.msra.mxu0 0.0
    %711 = vmatprep.subr.mxu0 0.0
    %712 = vmatpush1.msra.mxu0 0.0
    %713 = vmatprep.subr.mxu0 0.0
    %714 = vmatpush1.msra.mxu0 0.0
    %715 = vmatprep.subr.mxu0 0.0
    %716 = vmatpush1.msra.mxu0 0.0
    %717 = vmatprep.subr.mxu0 0.0
    %718 = vmatpush1.msra.mxu0 0.0
    %719 = vmatprep.subr.mxu0 0.0
    %720 = vmatpush1.msra.mxu0 0.0
    %721 = vmatprep.subr.mxu0 0.0
    %722 = vmatpush1.msra.mxu0 0.0
    %723 = vmatprep.subr.mxu0 0.0
    %724 = vmatpush1.msra.mxu0 0.0
    %725 = vmatprep.subr.mxu0 0.0
    %726 = vmatpush1.msra.mxu0 0.0
    %727 = vmatprep.subr.mxu0 0.0
    %728 = vmatpush1.msra.mxu0 0.0
    %729 = vmatprep.subr.mxu0 0.0
    %730 = vmatpush1.msra.mxu0 0.0
    %731 = vmatprep.subr.mxu0 0.0
    %732 = vmatpush1.msra.mxu0 0.0
    %733 = vmatprep.subr.mxu0 0.0
    %734 = vmatpush1.msra.mxu0 0.0
    %735 = vmatprep.subr.mxu0 0.0
    %736 = vmatpush1.msra.mxu0 0.0
    %737 = vmatprep.subr.mxu0 0.0
    %738 = vmatpush1.msra.mxu0 0.0
    %739 = vmatprep.subr.mxu0 0.0
    %740 = vmatpush1.msra.mxu0 0.0
    %741 = vmatprep.subr.mxu0 0.0
    %742 = vmatpush1.msra.mxu0 0.0
    %743 = vmatprep.subr.mxu0 0.0
    %744 = vmatpush1.msra.mxu0 0.0
    %745 = vmatprep.subr.mxu0 0.0
    %746 = vmatpush1.msra.mxu0 0.0
    %747 = vmatprep.subr.mxu0 0.0
    %748 = vmatpush1.msra.mxu0 0.0
    %749 = vmatprep.subr.mxu0 0.0
    %750 = vmatpush1.msra.mxu0 0.0
    %751 = vmatprep.mubr.f32.mxu0 0.0
    %752 = vmatmul.mubr.f32.gmra.mrb[0].mxu0 %v685
    %v753 = vpop.f32.mrb[0].mxu0
    %v754 = vadd.f32 0.0, %v753
    %v755 = vpop.f32.mrb[0].mxu0
    %v756 = vadd.f32 0.0, %v755
    %757 = vdwg.mxu0
    %758 = vmatprep.subr.mxu0 %v571
    %759 = vmatpush1.msra.mxu0 %v570
    %760 = vmatprep.subr.mxu0 %v587
    %761 = vmatpush1.msra.mxu0 %v586
    %762 = vmatprep.subr.mxu0 %v603
    %763 = vmatpush1.msra.mxu0 %v602
    %764 = vmatprep.subr.mxu0 %v619
    %765 = vmatpush1.msra.mxu0 %v618
    %766 = vmatprep.subr.mxu0 %v554
    %767 = vmatpush1.msra.mxu0 %v553
    %768 = vmatprep.subr.mxu0 %v635
    %769 = vmatpush1.msra.mxu0 %v634
    %770 = vmatprep.subr.mxu0 %v651
    %771 = vmatpush1.msra.mxu0 %v650
    %772 = vmatprep.subr.mxu0 %v667
    %773 = vmatpush1.msra.mxu0 %v666
    %774 = vmatprep.subr.mxu0 %v683
    %775 = vmatpush1.msra.mxu0 %v682
    %776 = vmatprep.subr.mxu0 0.0
    %777 = vmatpush1.msra.mxu0 0.0
    %778 = vmatprep.subr.mxu0 0.0
    %779 = vmatpush1.msra.mxu0 0.0
    %780 = vmatprep.subr.mxu0 0.0
    %781 = vmatpush1.msra.mxu0 0.0
    %782 = vmatprep.subr.mxu0 0.0
    %783 = vmatpush1.msra.mxu0 0.0
    %784 = vmatprep.subr.mxu0 0.0
    %785 = vmatpush1.msra.mxu0 0.0
    %786 = vmatprep.subr.mxu0 0.0
    %787 = vmatpush1.msra.mxu0 0.0
    %788 = vmatprep.subr.mxu0 0.0
    %789 = vmatpush1.msra.mxu0 0.0
    %790 = vmatprep.subr.mxu0 0.0
    %791 = vmatpush1.msra.mxu0 0.0
    %792 = vmatprep.subr.mxu0 0.0
    %793 = vmatpush1.msra.mxu0 0.0
    %794 = vmatprep.subr.mxu0 0.0
    %795 = vmatpush1.msra.mxu0 0.0
    %796 = vmatprep.subr.mxu0 0.0
    %797 = vmatpush1.msra.mxu0 0.0
    %798 = vmatprep.subr.mxu0 0.0
    %799 = vmatpush1.msra.mxu0 0.0
    %800 = vmatprep.subr.mxu0 0.0
    %801 = vmatpush1.msra.mxu0 0.0
    %802 = vmatprep.subr.mxu0 0.0
    %803 = vmatpush1.msra.mxu0 0.0
    %804 = vmatprep.subr.mxu0 0.0
    %805 = vmatpush1.msra.mxu0 0.0
    %806 = vmatprep.subr.mxu0 0.0
    %807 = vmatpush1.msra.mxu0 0.0
    %808 = vmatprep.subr.mxu0 0.0
    %809 = vmatpush1.msra.mxu0 0.0
    %810 = vmatprep.subr.mxu0 0.0
    %811 = vmatpush1.msra.mxu0 0.0
    %812 = vmatprep.subr.mxu0 0.0
    %813 = vmatpush1.msra.mxu0 0.0
    %814 = vmatprep.subr.mxu0 0.0
    %815 = vmatpush1.msra.mxu0 0.0
    %816 = vmatprep.subr.mxu0 0.0
    %817 = vmatpush1.msra.mxu0 0.0
    %818 = vmatprep.subr.mxu0 0.0
    %819 = vmatpush1.msra.mxu0 0.0
    %820 = vmatprep.subr.mxu0 0.0
    %821 = vmatpush1.msra.mxu0 0.0
    %822 = vmatprep.mubr.f32.mxu0 0.0
    %823 = vmatmul.mubr.f32.gmra.mrb[0].mxu0 %v685
    %v824 = vpop.f32.mrb[0].mxu0
    %v825 = vadd.f32 0.0, %v824
    %v826 = vpop.f32.mrb[0].mxu0
    %v827 = vadd.f32 0.0, %v826
    %828 = vdwg.mxu0
    %v829 = vadd.f32 %v754, %v756
    %v830 = vadd.f32 %v829, %v825
    %v831 = vadd.f32 %v830, %v827
    %832 = vadd.xlane.f32.xlu0 %v831
    %v833 = vpop.xlane.xlu0 %832
    %v834 = vmul.f32 %v833, 0.001953125
    %v835 = vsub.f32 %v754, %v834
    %v836 = vsub.f32 %v756, %v834
    %v837 = vsub.f32 %v825, %v834
    %v838 = vsub.f32 %v827, %v834
    %v839 = vmul.f32 %v835, %v835
    %v840 = vmul.f32 %v836, %v836
    %v841 = vmul.f32 %v837, %v837
    %v842 = vmul.f32 %v838, %v838
    %v843 = vadd.f32 %v839, %v840
    %v844 = vadd.f32 %v843, %v841
    %v845 = vadd.f32 %v844, %v842
    %846 = vadd.xlane.f32.xlu0 %v845
    %v847 = vpop.xlane.xlu0 %846
    %v848 = vmul.f32 %v847, 0.001953125
    %v849 = vadd.f32 %v848, 1e-05
    %v850 = vrsqrt.pop %v849
    %v851 = vmul.f32 %v850, %v86
    %v852 = vmul.f32 %v834, %v851
    %854 = vrot.lane.b32.xlu0 %v852, 1
    %v855 = vpop.permute.xlu0 %854
    %v857 = vsub.f32 %v86, %v855
    %859 = vset.pattern.permute.xlu0 2
    %860 = vperm.xlu0 %859, %v851
    %v861 = vpop.permute.xlu0 %860
    %v863 = vmul.f32 %v754, %v861
    %v864 = vmul.f32 %v756, %v861
    %v865 = vmul.f32 %v825, %v861
    %v866 = vmul.f32 %v827, %v861
    %868 = vset.pattern.permute.xlu0 3
    %869 = vperm.xlu0 %868, %v857
    %v870 = vpop.permute.xlu0 %869
    %v872 = vadd.f32 %v863, %v870
    %v873 = vadd.f32 %v864, %v870
    %v874 = vadd.f32 %v865, %v870
    %v875 = vadd.f32 %v866, %v870
    %v876 = vld [vmem:[%s3] sm:$0xff]
    %vm877 = vcmask 64512
    %v879 = vsel %vm877, %v876, 0
    %881 = vmatprep.subr.mxu0 %v83
    %882 = vmatpush1.msra.mxu0 %v82
    %883 = vmatprep.subr.mxu0 0.0
    %884 = vmatpush1.msra.mxu0 0.0
    %885 = vmatprep.subr.mxu0 0.0
    %886 = vmatpush1.msra.mxu0 0.0
    %887 = vmatprep.subr.mxu0 0.0
    %888 = vmatpush1.msra.mxu0 0.0
    %889 = vmatprep.subr.mxu0 0.0
    %890 = vmatpush1.msra.mxu0 0.0
    %891 = vmatprep.subr.mxu0 0.0
    %892 = vmatpush1.msra.mxu0 0.0
    %893 = vmatprep.subr.mxu0 0.0
    %894 = vmatpush1.msra.mxu0 0.0
    %895 = vmatprep.subr.mxu0 0.0
    %896 = vmatpush1.msra.mxu0 0.0
    %897 = vmatprep.subr.mxu0 0.0
    %898 = vmatpush1.msra.mxu0 0.0
    %899 = vmatprep.subr.mxu0 0.0
    %900 = vmatpush1.msra.mxu0 0.0
    %901 = vmatprep.subr.mxu0 0.0
    %902 = vmatpush1.msra.mxu0 0.0
    %903 = vmatprep.subr.mxu0 0.0
    %904 = vmatpush1.msra.mxu0 0.0
    %905 = vmatprep.subr.mxu0 0.0
    %906 = vmatpush1.msra.mxu0 0.0
    %907 = vmatprep.subr.mxu0 0.0
    %908 = vmatpush1.msra.mxu0 0.0
    %909 = vmatprep.subr.mxu0 0.0
    %910 = vmatpush1.msra.mxu0 0.0
    %911 = vmatprep.subr.mxu0 0.0
    %912 = vmatpush1.msra.mxu0 0.0
    %913 = vmatprep.subr.mxu0 0.0
    %914 = vmatpush1.msra.mxu0 0.0
    %915 = vmatprep.subr.mxu0 0.0
    %916 = vmatpush1.msra.mxu0 0.0
    %917 = vmatprep.subr.mxu0 0.0
    %918 = vmatpush1.msra.mxu0 0.0
    %919 = vmatprep.subr.mxu0 0.0
    %920 = vmatpush1.msra.mxu0 0.0
    %921 = vmatprep.subr.mxu0 0.0
    %922 = vmatpush1.msra.mxu0 0.0
    %923 = vmatprep.subr.mxu0 0.0
    %924 = vmatpush1.msra.mxu0 0.0
    %925 = vmatprep.subr.mxu0 0.0
    %926 = vmatpush1.msra.mxu0 0.0
    %927 = vmatprep.subr.mxu0 0.0
    %928 = vmatpush1.msra.mxu0 0.0
    %929 = vmatprep.subr.mxu0 0.0
    %930 = vmatpush1.msra.mxu0 0.0
    %931 = vmatprep.subr.mxu0 0.0
    %932 = vmatpush1.msra.mxu0 0.0
    %933 = vmatprep.subr.mxu0 0.0
    %934 = vmatpush1.msra.mxu0 0.0
    %935 = vmatprep.subr.mxu0 0.0
    %936 = vmatpush1.msra.mxu0 0.0
    %937 = vmatprep.subr.mxu0 0.0
    %938 = vmatpush1.msra.mxu0 0.0
    %939 = vmatprep.subr.mxu0 0.0
    %940 = vmatpush1.msra.mxu0 0.0
    %941 = vmatprep.subr.mxu0 0.0
    %942 = vmatpush1.msra.mxu0 0.0
    %943 = vmatprep.subr.mxu0 0.0
    %944 = vmatpush1.msra.mxu0 0.0
    %945 = vmatprep.mubr.f32.mxu0 0.0
    %946 = vmatmul.mubr.f32.gmra.mrb[0].mxu0 %v879
    %v947 = vpop.f32.mrb[0].mxu0
    %v948 = vadd.f32 0.0, %v947
    %v949 = vpop.f32.mrb[0].mxu0
    %v950 = vadd.f32 0.0, %v949
    %951 = vdwg.mxu0
    %952 = vmatprep.subr.mxu0 %v85
    %953 = vmatpush1.msra.mxu0 %v84
    %954 = vmatprep.subr.mxu0 0.0
    %955 = vmatpush1.msra.mxu0 0.0
    %956 = vmatprep.subr.mxu0 0.0
    %957 = vmatpush1.msra.mxu0 0.0
    %958 = vmatprep.subr.mxu0 0.0
    %959 = vmatpush1.msra.mxu0 0.0
    %960 = vmatprep.subr.mxu0 0.0
    %961 = vmatpush1.msra.mxu0 0.0
    %962 = vmatprep.subr.mxu0 0.0
    %963 = vmatpush1.msra.mxu0 0.0
    %964 = vmatprep.subr.mxu0 0.0
    %965 = vmatpush1.msra.mxu0 0.0
    %966 = vmatprep.subr.mxu0 0.0
    %967 = vmatpush1.msra.mxu0 0.0
    %968 = vmatprep.subr.mxu0 0.0
    %969 = vmatpush1.msra.mxu0 0.0
    %970 = vmatprep.subr.mxu0 0.0
    %971 = vmatpush1.msra.mxu0 0.0
    %972 = vmatprep.subr.mxu0 0.0
    %973 = vmatpush1.msra.mxu0 0.0
    %974 = vmatprep.subr.mxu0 0.0
    %975 = vmatpush1.msra.mxu0 0.0
    %976 = vmatprep.subr.mxu0 0.0
    %977 = vmatpush1.msra.mxu0 0.0
    %978 = vmatprep.subr.mxu0 0.0
    %979 = vmatpush1.msra.mxu0 0.0
    %980 = vmatprep.subr.mxu0 0.0
    %981 = vmatpush1.msra.mxu0 0.0
    %982 = vmatprep.subr.mxu0 0.0
    %983 = vmatpush1.msra.mxu0 0.0
    %984 = vmatprep.subr.mxu0 0.0
    %985 = vmatpush1.msra.mxu0 0.0
    %986 = vmatprep.subr.mxu0 0.0
    %987 = vmatpush1.msra.mxu0 0.0
    %988 = vmatprep.subr.mxu0 0.0
    %989 = vmatpush1.msra.mxu0 0.0
    %990 = vmatprep.subr.mxu0 0.0
    %991 = vmatpush1.msra.mxu0 0.0
    %992 = vmatprep.subr.mxu0 0.0
    %993 = vmatpush1.msra.mxu0 0.0
    %994 = vmatprep.subr.mxu0 0.0
    %995 = vmatpush1.msra.mxu0 0.0
    %996 = vmatprep.subr.mxu0 0.0
    %997 = vmatpush1.msra.mxu0 0.0
    %998 = vmatprep.subr.mxu0 0.0
    %999 = vmatpush1.msra.mxu0 0.0
    %1000 = vmatprep.subr.mxu0 0.0
    %1001 = vmatpush1.msra.mxu0 0.0
    %1002 = vmatprep.subr.mxu0 0.0
    %1003 = vmatpush1.msra.mxu0 0.0
    %1004 = vmatprep.subr.mxu0 0.0
    %1005 = vmatpush1.msra.mxu0 0.0
    %1006 = vmatprep.subr.mxu0 0.0
    %1007 = vmatpush1.msra.mxu0 0.0
    %1008 = vmatprep.subr.mxu0 0.0
    %1009 = vmatpush1.msra.mxu0 0.0
    %1010 = vmatprep.subr.mxu0 0.0
    %1011 = vmatpush1.msra.mxu0 0.0
    %1012 = vmatprep.subr.mxu0 0.0
    %1013 = vmatpush1.msra.mxu0 0.0
    %1014 = vmatprep.subr.mxu0 0.0
    %1015 = vmatpush1.msra.mxu0 0.0
    %1016 = vmatprep.mubr.f32.mxu0 0.0
    %1017 = vmatmul.mubr.f32.gmra.mrb[0].mxu0 %v879
    %v1018 = vpop.f32.mrb[0].mxu0
    %v1019 = vadd.f32 0.0, %v1018
    %v1020 = vpop.f32.mrb[0].mxu0
    %v1021 = vadd.f32 0.0, %v1020
    %1022 = vdwg.mxu0
    %v1023 = vadd.f32 %v948, %v950
    %v1024 = vadd.f32 %v1023, %v1019
    %v1025 = vadd.f32 %v1024, %v1021
    %1026 = vadd.xlane.f32.xlu0 %v1025
    %v1027 = vpop.xlane.xlu0 %1026
    %v1028 = vmul.f32 %v1027, 0.001953125
    %v1029 = vsub.f32 %v948, %v1028
    %v1030 = vsub.f32 %v950, %v1028
    %v1031 = vsub.f32 %v1019, %v1028
    %v1032 = vsub.f32 %v1021, %v1028
    %v1033 = vmul.f32 %v1029, %v1029
    %v1034 = vmul.f32 %v1030, %v1030
    %v1035 = vmul.f32 %v1031, %v1031
    %v1036 = vmul.f32 %v1032, %v1032
    %v1037 = vadd.f32 %v1033, %v1034
    %v1038 = vadd.f32 %v1037, %v1035
    %v1039 = vadd.f32 %v1038, %v1036
    %1040 = vadd.xlane.f32.xlu0 %v1039
    %v1041 = vpop.xlane.xlu0 %1040
    %v1042 = vmul.f32 %v1041, 0.001953125
    %v1043 = vadd.f32 %v1042, 1e-05
    %v1044 = vrsqrt.pop %v1043
    %v1045 = vmul.f32 %v1044, %v86
    %v1046 = vmul.f32 %v1028, %v1045
    %1048 = vrot.lane.b32.xlu0 %v1046, 1
    %v1049 = vpop.permute.xlu0 %1048
    %v1051 = vsub.f32 %v86, %v1049
    %1053 = vset.pattern.permute.xlu0 4
    %1054 = vperm.xlu0 %1053, %v1045
    %v1055 = vpop.permute.xlu0 %1054
    %v1057 = vmul.f32 %v948, %v1055
    %v1058 = vmul.f32 %v950, %v1055
    %v1059 = vmul.f32 %v1019, %v1055
    %v1060 = vmul.f32 %v1021, %v1055
    %1062 = vset.pattern.permute.xlu0 5
    %1063 = vperm.xlu0 %1062, %v1051
    %v1064 = vpop.permute.xlu0 %1063
    %v1066 = vadd.f32 %v1057, %v1064
    %v1067 = vadd.f32 %v1058, %v1064
    %v1068 = vadd.f32 %v1059, %v1064
    %v1069 = vadd.f32 %v1060, %v1064
    %v1070 = vadd.f32 %v872, %v1066
    %v1071 = vadd.f32 %v873, %v1067
    %v1072 = vadd.f32 %v874, %v1068
    %v1073 = vadd.f32 %v875, %v1069
    %v1074 = vmax.f32 %v1070, 0.0
    %v1075 = vmax.f32 %v1071, 0.0
    %v1076 = vmax.f32 %v1072, 0.0
    %v1077 = vmax.f32 %v1073, 0.0
    %1078 = vst [vmem:[#allocation11] sm:$0xff] %v1074
    %1079 = vst [vmem:[#allocation11 + $0x8] sm:$0xff] %v1075
    %1080 = vst [vmem:[#allocation11 + $0x10] sm:$0xff] %v1076
    %1081 = vst [vmem:[#allocation11 + $0x18] sm:$0xff] %v1077
    // Predicated region
    $region46: #{tpu_custom_call.1} parent=1 // pred_check
      _
    $region47: #{tpu_custom_call.1} parent=1 // pred_check_branch
      %1083 = sbr.rel (0) target = $region49
    $region48: #{tpu_custom_call.1} parent=1 // pred_region
      %s1085 = ssub.s32 512, 512
      %1086 = vsyncadd [#allocation4], %s1085
      %s1088 = sshll.u32 [#allocation11], 4
      %s1089 = int_to_ptr.vmem [resolvable:$true] %s1088
      %1091 = dma.vmem_to_hbm [thread:$0]  %s1089, 512, %s6, [#allocation4]
    $region49: #{tpu_custom_call.1} parent=1 // pred_fallthru
      _
    // Predicated region
    $region50: #{tpu_custom_call.1} parent=1 // pred_check
      _
    $region51: #{tpu_custom_call.1} parent=1 // pred_check_branch
      %1093 = sbr.rel (0) target = $region53
    $region52: #{tpu_custom_call.1} parent=1 // pred_region
      %1094 = dma.done [#allocation4], 512
    $region53: #{tpu_custom_call.1} parent=1 // pred_fallthru
      _
    %1095 = vsyncpa [#allocation3], 1
    %1096 = vsyncpa [#allocation6], 1
    %1097 = vsyncpa [#allocation9], 1
    %1098 = vsyncpa [#allocation4], 1

</llo_original>
